<compile_context>
chip_gen: v7x
topology: tpu7x:2x2x1
jax: 0.10.0
libtpu: 0.0.40
codegen_flags: <defaults>
</compile_context>

<pallas_src>
import functools

import numpy as np

import jax
import jax.numpy as jnp
from jax.experimental import pallas as pl
from jax.experimental.pallas import tpu as pltpu


# (in_channels, out_channels, kernel_size, padding) per layer; last entry is
# the plain Conv3d(2, 1, kernel_size=1) with no pad / no activation.
LAYERS = [
    (1, 16, 3, 1),
    (16, 16, 3, 1),
    (16, 16, 3, 1),
    (16, 8, 3, 1),
    (8, 8, 3, 1),
    (8, 8, 3, 1),
    (8, 4, 3, 1),
    (4, 2, 3, 1),
    (2, 1, 1, 0),
]

_MAX_C = 16   # max channel count in the schedule
_K3 = 27      # 3*3*3 taps


@functools.lru_cache(maxsize=None)
def _roll_sign():
    """Probe pltpu.roll's rotation direction once (tiny kernel, runs once).

    Returns +1 if pltpu.roll follows jnp.roll semantics (out[i] = x[i - shift]),
    -1 if it rotates the opposite way.  The fused decoder kernel bakes in
    whichever sign the hardware op actually uses.
    """
    def probe(x_ref, o_ref):
        o_ref[...] = pltpu.roll(x_ref[...], 1, axis=1)

    x = jax.lax.broadcasted_iota(jnp.float32, (8, 128), 1)
    y = pl.pallas_call(
        probe, out_shape=jax.ShapeDtypeStruct((8, 128), jnp.float32))(x)
    v = float(y[0, 0])
    if v == 127.0:
        return 1     # jnp.roll convention
    if v == 1.0:
        return -1    # opposite convention
    raise RuntimeError(f"unexpected pltpu.roll behaviour: y[0, 0] = {v}")


def _decoder_kernel(*refs, dims, conv_dims, sign):
    """Fused Decoder forward for ONE batch element (grid axis = batch).

    refs layout:
      refs[0]               x        [1, S]               (Cin = 1)
      refs[1 + 2*i]         W_i      [Cout_i, 27*Cin_i]   (i = 0..7, repacked)
      refs[2 + 2*i]         b_i      [Cout_i, 1]
      refs[1 + 2*n_conv]    wb_last  [3] in SMEM          (w0, w1, bias of 1x1)
      refs[2 + 2*n_conv]    out      [1, S]
      refs[3 + 2*n_conv]    xcol     [27*16, S]  VMEM scratch (im2col buffer)
    """
    D, H, W = dims
    S = D * H * W
    n_conv = len(conv_dims)
    x_ref = refs[0]
    wb_refs = refs[1:1 + 2 * n_conv]
    wb_last_ref = refs[1 + 2 * n_conv]
    o_ref = refs[2 + 2 * n_conv]
    xcol_ref = refs[3 + 2 * n_conv]

    # Boundary masks over the flattened spatial (lane) index.
    lane = jax.lax.broadcasted_iota(jnp.int32, (1, S), 1)
    w_idx = lane % W
    h_idx = (lane // W) % H
    d_idx = lane // (H * W)
    lo_mask = {"w": w_idx == 0, "h": h_idx == 0, "d": d_idx == 0}
    hi_mask = {"w": w_idx == W - 1, "h": h_idx == H - 1, "d": d_idx == D - 1}
    stride = {"w": 1, "h": W, "d": H * W}

    def reflect_shift(x, axis, delta):
        # out[:, s] = reflection-padded(x) sampled at offset `delta` along
        # `axis`:  interior lanes -> x[:, s + delta*stride],
        #          boundary plane -> x[:, s - delta*stride]   (mirror, pad=1).
        if delta == 0:
            return x
        k = delta * stride[axis]
        interior = pltpu.roll(x, (-sign * k) % S, axis=1)   # x[:, s + k]
        mirrored = pltpu.roll(x, (sign * k) % S, axis=1)    # x[:, s - k]
        mask = hi_mask[axis] if delta > 0 else lo_mask[axis]
        return jnp.where(mask, mirrored, interior)

    act = x_ref[...].astype(jnp.float32)                    # [1, S]

    # 8x ReflectionPad3d(1) -> Conv3d(k=3) -> (identity norm) -> ReLU, all in
    # VMEM/registers.  im2col row (kd*9 + kh*3 + kw)*cin + ci matches the
    # host-side weight repack transpose(w, (0,2,3,4,1)).reshape(cout, 27*cin).
    for li, (cin, cout) in enumerate(conv_dims):
        w_ref = wb_refs[2 * li]
        b_ref = wb_refs[2 * li + 1]
        for dw in (-1, 0, 1):
            xw = reflect_shift(act, "w", dw)
            for dh in (-1, 0, 1):
                xhw = reflect_shift(xw, "h", dh)
                for dd in (-1, 0, 1):
                    tap = (dd + 1) * 9 + (dh + 1) * 3 + (dw + 1)
                    xcol_ref[pl.ds(tap * cin, cin), :] = reflect_shift(xhw, "d", dd)
        rows = _K3 * cin
        acc = jnp.dot(w_ref[...], xcol_ref[pl.ds(0, rows), :],
                      preferred_element_type=jnp.float32)    # [cout, S]
        act = jnp.maximum(acc + b_ref[...], 0.0)             # bias + ReLU (f32)

    # Final plain Conv3d(2, 1, kernel_size=1): VPU weighted sum with scalars
    # from SMEM instead of a (1,2)x(2,S) MXU fill/drain.  No activation.
    out = (wb_last_ref[0] * act[0:1, :]
           + wb_last_ref[1] * act[1:2, :]
           + wb_last_ref[2])
    o_ref[...] = out.astype(o_ref.dtype)


def decoder_forward(x_ncdhw, params):
    """x_ncdhw: [N, 1, D, H, W] f32 -> [N, 1, D, H, W] (matches PyTorch Decoder)."""
    N, C, D, H, W = x_ncdhw.shape
    assert C == 1, "Decoder input must have 1 channel"
    S = D * H * W
    assert S % 128 == 0, "flattened spatial size must be a multiple of 128 lanes"

    conv_layers = LAYERS[:-1]                     # the eight 3x3x3 blocks
    conv_dims = tuple((cin, cout) for (cin, cout, _k, _p) in conv_layers)

    inputs = [x_ncdhw.reshape(N, 1, S).astype(jnp.float32)]
    in_specs = [pl.BlockSpec((pl.Squeezed(), 1, S), lambda n: (n, 0, 0))]

    flops = 0
    weight_bytes = 0
    for (cin, cout, k, _p), (w, b) in zip(conv_layers, params[:-1]):
        # [Cout, Cin, kd, kh, kw] -> [Cout, K^3*Cin], column = tap*Cin + ci.
        w2d = jnp.transpose(w, (0, 2, 3, 4, 1)).reshape(cout, k ** 3 * cin)
        b2 = b.reshape(cout, 1).astype(jnp.float32)
        inputs += [w2d.astype(jnp.float32), b2]
        in_specs += [pl.BlockSpec(w2d.shape, lambda n: (0, 0)),
                     pl.BlockSpec(b2.shape, lambda n: (0, 0))]
        flops += 2 * cout * (k ** 3 * cin) * S
        weight_bytes += (w2d.size + b2.size) * 4

    w_last, b_last = params[-1]                   # Conv3d(2, 1, k=1)
    wb_last = jnp.concatenate(
        [w_last.reshape(-1), b_last.reshape(-1)]).astype(jnp.float32)  # (3,)
    inputs.append(wb_last)
    in_specs.append(pl.BlockSpec(memory_space=pltpu.MemorySpace.SMEM))
    flops += 2 * 2 * S
    flops *= N

    kernel = functools.partial(_decoder_kernel, dims=(D, H, W),
                               conv_dims=conv_dims, sign=_roll_sign())

    y = pl.pallas_call(
        kernel,
        out_shape=jax.ShapeDtypeStruct((N, 1, S), jnp.float32),
        grid=(N,),
        in_specs=in_specs,
        out_specs=pl.BlockSpec((pl.Squeezed(), 1, S), lambda n: (n, 0, 0)),
        scratch_shapes=[pltpu.VMEM((_K3 * _MAX_C, S), jnp.float32)],
        compiler_params=pltpu.CompilerParams(
            dimension_semantics=("parallel",),
            vmem_limit_bytes=32 * 1024 * 1024),
        cost_estimate=pl.CostEstimate(
            flops=flops, transcendentals=0,
            bytes_accessed=2 * N * S * 4 + weight_bytes + 16),
    )(*inputs)
    return y.reshape(N, 1, D, H, W)


def init_params(key):
    """Deterministic synthetic weights, PyTorch Conv3d shapes/layout."""
    params = []
    for (cin, cout, k, _pad) in LAYERS:
        key, kw_key, kb_key = jax.random.split(key, 3)
        fan_in = cin * k ** 3
        bound = fan_in ** -0.5
        w = jax.random.uniform(kw_key, (cout, cin, k, k, k), jnp.float32,
                               -bound, bound)
        b = jax.random.uniform(kb_key, (cout,), jnp.float32, -bound, bound)
        params.append((w, b))
    return params


def _reference_forward(x_ncdhw, params):
    """Pure-JAX (XLA) reference of the same Decoder, for a numerics cross-check."""
    x = x_ncdhw
    n_layers = len(LAYERS)
    for i, ((_cin, cout, _k, pad), (w, b)) in enumerate(zip(LAYERS, params)):
        if pad:
            x = jnp.pad(x, ((0, 0), (0, 0), (pad, pad), (pad, pad), (pad, pad)),
                        mode="reflect")
        x = jax.lax.conv_general_dilated(
            x, w, window_strides=(1, 1, 1), padding="VALID",
            dimension_numbers=("NCDHW", "OIDHW", "NCDHW"),
            precision=jax.lax.Precision.HIGHEST)
        x = x + b.reshape(1, cout, 1, 1, 1)
        if i < n_layers - 1:
            x = jnp.maximum(x, 0.0)
    return x


if __name__ == "__main__":
    key = jax.random.PRNGKey(0)
    kx, kp = jax.random.split(key)

    # Small shapes consistent with the module: batch=2, C=1, D=H=W=8 (NCDHW).
    x = jax.random.normal(kx, (2, 1, 8, 8, 8), jnp.float32)
    params = init_params(kp)

    y = decoder_forward(x, params)
    jax.block_until_ready(y)
    assert y.shape == (2, 1, 8, 8, 8), y.shape

    # Cross-check the fused kernel against the XLA reference.
    y_ref = _reference_forward(x, params)
    np.testing.assert_allclose(np.asarray(y), np.asarray(y_ref),
                               rtol=1e-2, atol=1e-3)
    print("KERNEL_OK")
</pallas_src>

<mosaic_0001>
module attributes {stable_mosaic.version = 11 : i64} {
  func.func @probe(%arg0: memref<8x128xf32, #tpu.memory_space<vmem>>, %arg1: memref<8x128xf32, #tpu.memory_space<vmem>>) attributes {dimension_semantics = [], scalar_prefetch = 0 : i64, scratch_operands = 0 : i64, tpu.core_type = #tpu.core_type<tc>} {
    %c0 = arith.constant 0 : index
    %c0_0 = arith.constant 0 : index
    %0 = vector.load %arg0[%c0, %c0_0] : memref<8x128xf32, #tpu.memory_space<vmem>>, vector<8x128xf32>
    %c1_i32 = arith.constant 1 : i32
    %1 = tpu.dynamic_rotate %0 by %c1_i32 dim 1 : vector<8x128xf32>, i32 -> vector<8x128xf32>
    %c0_1 = arith.constant 0 : index
    %c0_2 = arith.constant 0 : index
    %2 = vector.load %arg1[%c0_1, %c0_2] : memref<8x128xf32, #tpu.memory_space<vmem>>, vector<8x128xf32>
    tpu.vector_store %arg1[%c0_1, %c0_2], %1 {strides = array<i32>} : memref<8x128xf32, #tpu.memory_space<vmem>>, vector<8x128xf32>,
    return
  }
}

</mosaic_0001>

<llo_original>
// kernel: tpu_custom_call.1
$region0: #{tpu_custom_call.1}
  #allocation0 [shape = 'u32[]', space=smem, size = 0x4, offset = 0x4, fixed_abs, tag = 'smem constant byte address 0x4 - core index']
  #allocation1 [shape = 'u32[144,128]{1,0:T(1,128)}', space=vmem, size = 0x12000, scoped, tag = 'internal scratch']
  %s0 = inlined_call_operand.hbm [shape: f32[8,128], index: 0, kind: input, shape index: {}]
  %s1 = inlined_call_operand.hbm [shape: f32[8,128], index: 1, kind: output, shape index: {}]
  %s2 = sld [smem:[#allocation0]]
  $region18: #{tpu_custom_call.1} parent=0
    _
  %s4 = ssub.s32 1, %s2
  %s5 = scalar_select 0, %s4, %s2
  $region1: #{tpu_custom_call.1} parent=0
    #allocation2 [shape = 'u8[4096]{0}', space=vmem, size = 0x1000, scoped, tag = 'input window, operand 0, single buffered']
    #allocation3 [shape = 's32[1]{0}', space=sflag, size = 0x4, scoped, tag = 'scoped memory for tpu_custom_call.1']
    #allocation4 [shape = 's32[1]{0}', space=sflag, size = 0x4, scoped, tag = 'scoped memory for tpu_custom_call.1']
    #allocation5 [shape = 'u8[4096]{0}', space=vmem, size = 0x1000, scoped, tag = 'output window, operand 0, single buffered']
    %6 = vsyncpa [#allocation3], 0
    %7 = vsyncpa [#allocation4], 0
    // Predicated region
    $region2: #{tpu_custom_call.1} parent=1 // pred_check
      _
    $region3: #{tpu_custom_call.1} parent=1 // pred_check_branch
      %9 = sbr.rel (0) target = $region5
    $region4: #{tpu_custom_call.1} parent=1 // pred_region
      %s11 = ssub.s32 128, 128
      %12 = vsyncadd [#allocation3], %s11
      %s14 = sshll.u32 [#allocation2], 4
      %s15 = int_to_ptr.vmem [resolvable:$true] %s14
      %17 = dma.hbm_to_vmem [thread:$0]  %s0, 128, %s15, [#allocation3]
    $region5: #{tpu_custom_call.1} parent=1 // pred_fallthru
      _
    // Predicated region
    $region6: #{tpu_custom_call.1} parent=1 // pred_check
      _
    $region7: #{tpu_custom_call.1} parent=1 // pred_check_branch
      %19 = sbr.rel (0) target = $region9
    $region8: #{tpu_custom_call.1} parent=1 // pred_region
      %20 = dma.done [#allocation3], 128
    $region9: #{tpu_custom_call.1} parent=1 // pred_fallthru
      _
    %v21 = vld [vmem:[#allocation2] sm:$0xff]
    %22 = vrot.lane.b32.xlu0 %v21, 1
    %v23 = vpop.permute.xlu0 %22
    %24 = vst [vmem:[#allocation5] sm:$0xff] %v23
    // Predicated region
    $region10: #{tpu_custom_call.1} parent=1 // pred_check
      _
    $region11: #{tpu_custom_call.1} parent=1 // pred_check_branch
      %26 = sbr.rel (0) target = $region13
    $region12: #{tpu_custom_call.1} parent=1 // pred_region
      %s28 = ssub.s32 128, 128
      %29 = vsyncadd [#allocation4], %s28
      %s31 = sshll.u32 [#allocation5], 4
      %s32 = int_to_ptr.vmem [resolvable:$true] %s31
      %34 = dma.vmem_to_hbm [thread:$0]  %s32, 128, %s1, [#allocation4]
    $region13: #{tpu_custom_call.1} parent=1 // pred_fallthru
      _
    // Predicated region
    $region14: #{tpu_custom_call.1} parent=1 // pred_check
      _
    $region15: #{tpu_custom_call.1} parent=1 // pred_check_branch
      %36 = sbr.rel (0) target = $region17
    $region16: #{tpu_custom_call.1} parent=1 // pred_region
      %37 = dma.done [#allocation4], 128
    $region17: #{tpu_custom_call.1} parent=1 // pred_fallthru
      _
    %38 = vsyncpa [#allocation3], 1
    %39 = vsyncpa [#allocation4], 1

</llo_original>
